<compile_context>
chip_gen: v7x
topology: tpu7x:2x2x1
jax: 0.10.0
libtpu: 0.0.40
codegen_flags: <defaults>
</compile_context>

<pallas_src>
import jax
import jax.numpy as jnp
from jax.experimental import pallas as pl
from jax.experimental.pallas import tpu as pltpu


def _round_up(x, m):
    return (x + m - 1) // m * m


def messaging_kernel(src_ref, dst_ref, w2_ref, feat_ref, out_src_ref, out_dst_ref):
    n = w2_ref.shape[0]
    e_num = out_src_ref.shape[0]

    # adj = sigmoid(W2); M' = adj @ adj + 0.5 * adj.  (16x16 -> trivially cheap,
    # recomputed per feature tile instead of carrying scratch across the grid.)
    adj = jax.nn.sigmoid(w2_ref[...])
    m = jnp.dot(adj, adj, preferred_element_type=jnp.float32) + 0.5 * adj

    # out = M' @ feat + feat   ("+ feat" is the folded identity term).
    feat = feat_ref[...]
    gnn = jnp.dot(m, feat, preferred_element_type=jnp.float32) + feat

    # Fused row gather: build (E, N) one-hot selectors from the SMEM-prefetched
    # indices and gather with two small MXU matmuls (no dynamic VMEM slicing).
    row_ids = jax.lax.broadcasted_iota(jnp.int32, (e_num, n), 0)
    col_ids = jax.lax.broadcasted_iota(jnp.int32, (e_num, n), 1)
    oh_src = jnp.zeros((e_num, n), jnp.float32)
    oh_dst = jnp.zeros((e_num, n), jnp.float32)
    for e in range(e_num):  # e_num is small and static -> unrolled at trace time
        oh_src = jnp.where((row_ids == e) & (col_ids == src_ref[e]), 1.0, oh_src)
        oh_dst = jnp.where((row_ids == e) & (col_ids == dst_ref[e]), 1.0, oh_dst)

    out_src_ref[...] = jnp.dot(oh_src, gnn, preferred_element_type=jnp.float32)
    out_dst_ref[...] = jnp.dot(oh_dst, gnn, preferred_element_type=jnp.float32)


@jax.jit
def messaging_forward(w2, node_feature, src, dst):
    n = w2.shape[0]
    f = node_feature.shape[1]
    e_num = src.shape[0]

    src = src.astype(jnp.int32)
    dst = dst.astype(jnp.int32)

    # Lane-dense feature/output layout: pad F up to a multiple of 128.
    f_pad = _round_up(f, 128)
    if f_pad != f:
        node_feature = jnp.pad(node_feature, ((0, 0), (0, f_pad - f)))

    # Feature-axis tiling: keep tiles >= 256 lanes; 512-lane tiles let v7x's two
    # TensorCores split the work and give v5e/v6e DMA/compute overlap.
    if f_pad >= 1024 and f_pad % 512 == 0:
        ft = 512
    else:
        ft = f_pad
    num_tiles = f_pad // ft

    flops = (
        2 * n * n * n * num_tiles          # adj @ adj (recomputed per tile)
        + 2 * n * n * f_pad                # M' @ feat
        + 2 * (2 * e_num * n * f_pad)      # two one-hot gather matmuls
    )
    bytes_accessed = 4 * (n * n * num_tiles + n * f_pad + 2 * e_num * f_pad)
    cost = pl.CostEstimate(
        flops=flops,
        transcendentals=n * n * num_tiles,
        bytes_accessed=bytes_accessed,
    )

    out_src_p, out_dst_p = pl.pallas_call(
        messaging_kernel,
        out_shape=(
            jax.ShapeDtypeStruct((e_num, f_pad), jnp.float32),
            jax.ShapeDtypeStruct((e_num, f_pad), jnp.float32),
        ),
        grid_spec=pltpu.PrefetchScalarGridSpec(
            num_scalar_prefetch=2,
            grid=(num_tiles,),
            in_specs=[
                pl.BlockSpec((n, n), lambda j, s, d: (0, 0)),
                pl.BlockSpec((n, ft), lambda j, s, d: (0, j)),
            ],
            out_specs=[
                pl.BlockSpec((e_num, ft), lambda j, s, d: (0, j)),
                pl.BlockSpec((e_num, ft), lambda j, s, d: (0, j)),
            ],
        ),
        compiler_params=pltpu.CompilerParams(
            dimension_semantics=("parallel",),
            vmem_limit_bytes=4 * 1024 * 1024,
        ),
        cost_estimate=cost,
    )(src, dst, w2, node_feature)

    # Slice the lane padding back off (tiny).
    return out_src_p[:, :f], out_dst_p[:, :f]


if __name__ == "__main__":
    key = jax.random.PRNGKey(0)
    k_adj, k_w2, k_feat, k_src, k_dst = jax.random.split(key, 5)

    node_num = 16
    feature_dim = 1000  # matches torch.randn((node_num, 1000)) in forward()
    edge_num = 8

    # Deterministic synthetic adjacency (binary), matching __init__ semantics:
    #   adj_norm = adj / (adj.sum(axis=1) + 1e-8)
    #   W2       = adj_norm + randn(N, N)
    adj_raw = (jax.random.uniform(k_adj, (node_num, node_num)) > 0.5).astype(
        jnp.float32
    )
    adj_norm = adj_raw / (adj_raw.sum(axis=1) + 1e-8)
    w2 = adj_norm + jax.random.normal(k_w2, (node_num, node_num), jnp.float32)

    # forward() draws fresh random node features; made deterministic here.
    # TODO(synk): the in-forward torch.randn is replaced by a fixed PRNG draw.
    node_feature = jax.random.normal(k_feat, (node_num, feature_dim), jnp.float32)

    src = jax.random.randint(k_src, (edge_num,), 0, node_num, dtype=jnp.int32)
    dst = jax.random.randint(k_dst, (edge_num,), 0, node_num, dtype=jnp.int32)

    out_src, out_dst = messaging_forward(w2, node_feature, src, dst)
    jax.block_until_ready((out_src, out_dst))

    # Pure-JAX reference check.
    adj_s = jax.nn.sigmoid(w2)
    m_ref = adj_s @ adj_s + 0.5 * adj_s + jnp.eye(node_num, dtype=jnp.float32)
    gnn_ref = m_ref @ node_feature
    assert jnp.allclose(out_src, gnn_ref[src], atol=1e-4, rtol=1e-4)
    assert jnp.allclose(out_dst, gnn_ref[dst], atol=1e-4, rtol=1e-4)

    print("KERNEL_OK")
</pallas_src>

<mosaic_0001>
module attributes {stable_mosaic.version = 11 : i64} {
  func.func @messaging_kernel(%arg0: i32, %arg1: memref<8xi32, #tpu.memory_space<smem>>, %arg2: memref<8xi32, #tpu.memory_space<smem>>, %arg3: memref<16x16xf32, #tpu.memory_space<vmem>>, %arg4: memref<16x512xf32, #tpu.memory_space<vmem>>, %arg5: memref<8x512xf32, #tpu.memory_space<vmem>>, %arg6: memref<8x512xf32, #tpu.memory_space<vmem>>) attributes {dimension_semantics = [#tpu.dimension_semantics<parallel>], iteration_bounds = array<i64: 2>, scalar_prefetch = 2 : i64, scratch_operands = 0 : i64, tpu.core_type = #tpu.core_type<tc>, window_params = [{pipeline_mode = #tpu.pipeline_mode<synchronous>, transform_indices = @transform_0, window_bounds = array<i64: 16, 16>}, {transform_indices = @transform_1, window_bounds = array<i64: 16, 512>}, {transform_indices = @transform_2, window_bounds = array<i64: 8, 512>}, {transform_indices = @transform_3, window_bounds = array<i64: 8, 512>}]} {
    %c0 = arith.constant 0 : index
    %c0_0 = arith.constant 0 : index
    %0 = vector.load %arg3[%c0, %c0_0] : memref<16x16xf32, #tpu.memory_space<vmem>>, vector<16x16xf32>
    %1 = arith.negf %0 : vector<16x16xf32>
    %2 = math.exp %1 : vector<16x16xf32>
    %cst = arith.constant 1.000000e+00 : f32
    %3 = vector.broadcast %cst : f32 to vector<16x16xf32>
    %4 = arith.addf %3, %2 : vector<16x16xf32>
    %5 = arith.divf %3, %4 : vector<16x16xf32>
    %cst_1 = arith.constant dense<0.000000e+00> : vector<16x16xf32>
    %6 = tpu.matmul %5, %5, %cst_1 {dimension_numbers = #tpu.dot_dimension_numbers<[1], [0], [0], [1], [0, 0, 1, 1], [], []>} : vector<16x16xf32>, vector<16x16xf32>, vector<16x16xf32> -> vector<16x16xf32>
    %cst_2 = arith.constant 5.000000e-01 : f32
    %7 = vector.broadcast %cst_2 : f32 to vector<16x16xf32>
    %8 = arith.mulf %7, %5 : vector<16x16xf32>
    %9 = arith.addf %6, %8 : vector<16x16xf32>
    %c0_3 = arith.constant 0 : index
    %c0_4 = arith.constant 0 : index
    %10 = vector.load %arg4[%c0_3, %c0_4] : memref<16x512xf32, #tpu.memory_space<vmem>>, vector<16x512xf32>
    %cst_5 = arith.constant dense<0.000000e+00> : vector<16x512xf32>
    %11 = tpu.matmul %9, %10, %cst_5 {dimension_numbers = #tpu.dot_dimension_numbers<[1], [0], [0], [1], [0, 0, 1, 1], [], []>} : vector<16x16xf32>, vector<16x512xf32>, vector<16x512xf32> -> vector<16x512xf32>
    %12 = arith.addf %11, %10 : vector<16x512xf32>
    %13 = tpu.iota {dimensions = array<i32: 0>} : vector<8x16xi32>
    %14 = tpu.iota {dimensions = array<i32: 1>} : vector<8x16xi32>
    %cst_6 = arith.constant 0.000000e+00 : f32
    %15 = vector.broadcast %cst_6 : f32 to vector<8x16xf32>
    %cst_7 = arith.constant 0.000000e+00 : f32
    %16 = vector.broadcast %cst_7 : f32 to vector<8x16xf32>
    %c0_i32 = arith.constant 0 : i32
    %17 = vector.broadcast %c0_i32 : i32 to vector<8x16xi32>
    %18 = arith.cmpi eq, %13, %17 : vector<8x16xi32>
    %c0_8 = arith.constant 0 : index
    %19 = memref.load %arg1[%c0_8] : memref<8xi32, #tpu.memory_space<smem>>
    %20 = vector.broadcast %19 : i32 to vector<8x16xi32>
    %21 = arith.cmpi eq, %14, %20 : vector<8x16xi32>
    %22 = arith.andi %18, %21 : vector<8x16xi1>
    %cst_9 = arith.constant 1.000000e+00 : f32
    %23 = vector.broadcast %cst_9 : f32 to vector<8x16xf32>
    %24 = arith.select %22, %23, %15 : vector<8x16xi1>, vector<8x16xf32>
    %c0_i32_10 = arith.constant 0 : i32
    %25 = vector.broadcast %c0_i32_10 : i32 to vector<8x16xi32>
    %26 = arith.cmpi eq, %13, %25 : vector<8x16xi32>
    %c0_11 = arith.constant 0 : index
    %27 = memref.load %arg2[%c0_11] : memref<8xi32, #tpu.memory_space<smem>>
    %28 = vector.broadcast %27 : i32 to vector<8x16xi32>
    %29 = arith.cmpi eq, %14, %28 : vector<8x16xi32>
    %30 = arith.andi %26, %29 : vector<8x16xi1>
    %cst_12 = arith.constant 1.000000e+00 : f32
    %31 = vector.broadcast %cst_12 : f32 to vector<8x16xf32>
    %32 = arith.select %30, %31, %16 : vector<8x16xi1>, vector<8x16xf32>
    %c1_i32 = arith.constant 1 : i32
    %33 = vector.broadcast %c1_i32 : i32 to vector<8x16xi32>
    %34 = arith.cmpi eq, %13, %33 : vector<8x16xi32>
    %c1 = arith.constant 1 : index
    %35 = memref.load %arg1[%c1] : memref<8xi32, #tpu.memory_space<smem>>
    %36 = vector.broadcast %35 : i32 to vector<8x16xi32>
    %37 = arith.cmpi eq, %14, %36 : vector<8x16xi32>
    %38 = arith.andi %34, %37 : vector<8x16xi1>
    %cst_13 = arith.constant 1.000000e+00 : f32
    %39 = vector.broadcast %cst_13 : f32 to vector<8x16xf32>
    %40 = arith.select %38, %39, %24 : vector<8x16xi1>, vector<8x16xf32>
    %c1_i32_14 = arith.constant 1 : i32
    %41 = vector.broadcast %c1_i32_14 : i32 to vector<8x16xi32>
    %42 = arith.cmpi eq, %13, %41 : vector<8x16xi32>
    %c1_15 = arith.constant 1 : index
    %43 = memref.load %arg2[%c1_15] : memref<8xi32, #tpu.memory_space<smem>>
    %44 = vector.broadcast %43 : i32 to vector<8x16xi32>
    %45 = arith.cmpi eq, %14, %44 : vector<8x16xi32>
    %46 = arith.andi %42, %45 : vector<8x16xi1>
    %cst_16 = arith.constant 1.000000e+00 : f32
    %47 = vector.broadcast %cst_16 : f32 to vector<8x16xf32>
    %48 = arith.select %46, %47, %32 : vector<8x16xi1>, vector<8x16xf32>
    %c2_i32 = arith.constant 2 : i32
    %49 = vector.broadcast %c2_i32 : i32 to vector<8x16xi32>
    %50 = arith.cmpi eq, %13, %49 : vector<8x16xi32>
    %c2 = arith.constant 2 : index
    %51 = memref.load %arg1[%c2] : memref<8xi32, #tpu.memory_space<smem>>
    %52 = vector.broadcast %51 : i32 to vector<8x16xi32>
    %53 = arith.cmpi eq, %14, %52 : vector<8x16xi32>
    %54 = arith.andi %50, %53 : vector<8x16xi1>
    %cst_17 = arith.constant 1.000000e+00 : f32
    %55 = vector.broadcast %cst_17 : f32 to vector<8x16xf32>
    %56 = arith.select %54, %55, %40 : vector<8x16xi1>, vector<8x16xf32>
    %c2_i32_18 = arith.constant 2 : i32
    %57 = vector.broadcast %c2_i32_18 : i32 to vector<8x16xi32>
    %58 = arith.cmpi eq, %13, %57 : vector<8x16xi32>
    %c2_19 = arith.constant 2 : index
    %59 = memref.load %arg2[%c2_19] : memref<8xi32, #tpu.memory_space<smem>>
    %60 = vector.broadcast %59 : i32 to vector<8x16xi32>
    %61 = arith.cmpi eq, %14, %60 : vector<8x16xi32>
    %62 = arith.andi %58, %61 : vector<8x16xi1>
    %cst_20 = arith.constant 1.000000e+00 : f32
    %63 = vector.broadcast %cst_20 : f32 to vector<8x16xf32>
    %64 = arith.select %62, %63, %48 : vector<8x16xi1>, vector<8x16xf32>
    %c3_i32 = arith.constant 3 : i32
    %65 = vector.broadcast %c3_i32 : i32 to vector<8x16xi32>
    %66 = arith.cmpi eq, %13, %65 : vector<8x16xi32>
    %c3 = arith.constant 3 : index
    %67 = memref.load %arg1[%c3] : memref<8xi32, #tpu.memory_space<smem>>
    %68 = vector.broadcast %67 : i32 to vector<8x16xi32>
    %69 = arith.cmpi eq, %14, %68 : vector<8x16xi32>
    %70 = arith.andi %66, %69 : vector<8x16xi1>
    %cst_21 = arith.constant 1.000000e+00 : f32
    %71 = vector.broadcast %cst_21 : f32 to vector<8x16xf32>
    %72 = arith.select %70, %71, %56 : vector<8x16xi1>, vector<8x16xf32>
    %c3_i32_22 = arith.constant 3 : i32
    %73 = vector.broadcast %c3_i32_22 : i32 to vector<8x16xi32>
    %74 = arith.cmpi eq, %13, %73 : vector<8x16xi32>
    %c3_23 = arith.constant 3 : index
    %75 = memref.load %arg2[%c3_23] : memref<8xi32, #tpu.memory_space<smem>>
    %76 = vector.broadcast %75 : i32 to vector<8x16xi32>
    %77 = arith.cmpi eq, %14, %76 : vector<8x16xi32>
    %78 = arith.andi %74, %77 : vector<8x16xi1>
    %cst_24 = arith.constant 1.000000e+00 : f32
    %79 = vector.broadcast %cst_24 : f32 to vector<8x16xf32>
    %80 = arith.select %78, %79, %64 : vector<8x16xi1>, vector<8x16xf32>
    %c4_i32 = arith.constant 4 : i32
    %81 = vector.broadcast %c4_i32 : i32 to vector<8x16xi32>
    %82 = arith.cmpi eq, %13, %81 : vector<8x16xi32>
    %c4 = arith.constant 4 : index
    %83 = memref.load %arg1[%c4] : memref<8xi32, #tpu.memory_space<smem>>
    %84 = vector.broadcast %83 : i32 to vector<8x16xi32>
    %85 = arith.cmpi eq, %14, %84 : vector<8x16xi32>
    %86 = arith.andi %82, %85 : vector<8x16xi1>
    %cst_25 = arith.constant 1.000000e+00 : f32
    %87 = vector.broadcast %cst_25 : f32 to vector<8x16xf32>
    %88 = arith.select %86, %87, %72 : vector<8x16xi1>, vector<8x16xf32>
    %c4_i32_26 = arith.constant 4 : i32
    %89 = vector.broadcast %c4_i32_26 : i32 to vector<8x16xi32>
    %90 = arith.cmpi eq, %13, %89 : vector<8x16xi32>
    %c4_27 = arith.constant 4 : index
    %91 = memref.load %arg2[%c4_27] : memref<8xi32, #tpu.memory_space<smem>>
    %92 = vector.broadcast %91 : i32 to vector<8x16xi32>
    %93 = arith.cmpi eq, %14, %92 : vector<8x16xi32>
    %94 = arith.andi %90, %93 : vector<8x16xi1>
    %cst_28 = arith.constant 1.000000e+00 : f32
    %95 = vector.broadcast %cst_28 : f32 to vector<8x16xf32>
    %96 = arith.select %94, %95, %80 : vector<8x16xi1>, vector<8x16xf32>
    %c5_i32 = arith.constant 5 : i32
    %97 = vector.broadcast %c5_i32 : i32 to vector<8x16xi32>
    %98 = arith.cmpi eq, %13, %97 : vector<8x16xi32>
    %c5 = arith.constant 5 : index
    %99 = memref.load %arg1[%c5] : memref<8xi32, #tpu.memory_space<smem>>
    %100 = vector.broadcast %99 : i32 to vector<8x16xi32>
    %101 = arith.cmpi eq, %14, %100 : vector<8x16xi32>
    %102 = arith.andi %98, %101 : vector<8x16xi1>
    %cst_29 = arith.constant 1.000000e+00 : f32
    %103 = vector.broadcast %cst_29 : f32 to vector<8x16xf32>
    %104 = arith.select %102, %103, %88 : vector<8x16xi1>, vector<8x16xf32>
    %c5_i32_30 = arith.constant 5 : i32
    %105 = vector.broadcast %c5_i32_30 : i32 to vector<8x16xi32>
    %106 = arith.cmpi eq, %13, %105 : vector<8x16xi32>
    %c5_31 = arith.constant 5 : index
    %107 = memref.load %arg2[%c5_31] : memref<8xi32, #tpu.memory_space<smem>>
    %108 = vector.broadcast %107 : i32 to vector<8x16xi32>
    %109 = arith.cmpi eq, %14, %108 : vector<8x16xi32>
    %110 = arith.andi %106, %109 : vector<8x16xi1>
    %cst_32 = arith.constant 1.000000e+00 : f32
    %111 = vector.broadcast %cst_32 : f32 to vector<8x16xf32>
    %112 = arith.select %110, %111, %96 : vector<8x16xi1>, vector<8x16xf32>
    %c6_i32 = arith.constant 6 : i32
    %113 = vector.broadcast %c6_i32 : i32 to vector<8x16xi32>
    %114 = arith.cmpi eq, %13, %113 : vector<8x16xi32>
    %c6 = arith.constant 6 : index
    %115 = memref.load %arg1[%c6] : memref<8xi32, #tpu.memory_space<smem>>
    %116 = vector.broadcast %115 : i32 to vector<8x16xi32>
    %117 = arith.cmpi eq, %14, %116 : vector<8x16xi32>
    %118 = arith.andi %114, %117 : vector<8x16xi1>
    %cst_33 = arith.constant 1.000000e+00 : f32
    %119 = vector.broadcast %cst_33 : f32 to vector<8x16xf32>
    %120 = arith.select %118, %119, %104 : vector<8x16xi1>, vector<8x16xf32>
    %c6_i32_34 = arith.constant 6 : i32
    %121 = vector.broadcast %c6_i32_34 : i32 to vector<8x16xi32>
    %122 = arith.cmpi eq, %13, %121 : vector<8x16xi32>
    %c6_35 = arith.constant 6 : index
    %123 = memref.load %arg2[%c6_35] : memref<8xi32, #tpu.memory_space<smem>>
    %124 = vector.broadcast %123 : i32 to vector<8x16xi32>
    %125 = arith.cmpi eq, %14, %124 : vector<8x16xi32>
    %126 = arith.andi %122, %125 : vector<8x16xi1>
    %cst_36 = arith.constant 1.000000e+00 : f32
    %127 = vector.broadcast %cst_36 : f32 to vector<8x16xf32>
    %128 = arith.select %126, %127, %112 : vector<8x16xi1>, vector<8x16xf32>
    %c7_i32 = arith.constant 7 : i32
    %129 = vector.broadcast %c7_i32 : i32 to vector<8x16xi32>
    %130 = arith.cmpi eq, %13, %129 : vector<8x16xi32>
    %c7 = arith.constant 7 : index
    %131 = memref.load %arg1[%c7] : memref<8xi32, #tpu.memory_space<smem>>
    %132 = vector.broadcast %131 : i32 to vector<8x16xi32>
    %133 = arith.cmpi eq, %14, %132 : vector<8x16xi32>
    %134 = arith.andi %130, %133 : vector<8x16xi1>
    %cst_37 = arith.constant 1.000000e+00 : f32
    %135 = vector.broadcast %cst_37 : f32 to vector<8x16xf32>
    %136 = arith.select %134, %135, %120 : vector<8x16xi1>, vector<8x16xf32>
    %c7_i32_38 = arith.constant 7 : i32
    %137 = vector.broadcast %c7_i32_38 : i32 to vector<8x16xi32>
    %138 = arith.cmpi eq, %13, %137 : vector<8x16xi32>
    %c7_39 = arith.constant 7 : index
    %139 = memref.load %arg2[%c7_39] : memref<8xi32, #tpu.memory_space<smem>>
    %140 = vector.broadcast %139 : i32 to vector<8x16xi32>
    %141 = arith.cmpi eq, %14, %140 : vector<8x16xi32>
    %142 = arith.andi %138, %141 : vector<8x16xi1>
    %cst_40 = arith.constant 1.000000e+00 : f32
    %143 = vector.broadcast %cst_40 : f32 to vector<8x16xf32>
    %144 = arith.select %142, %143, %128 : vector<8x16xi1>, vector<8x16xf32>
    %cst_41 = arith.constant dense<0.000000e+00> : vector<8x512xf32>
    %145 = tpu.matmul %136, %12, %cst_41 {dimension_numbers = #tpu.dot_dimension_numbers<[1], [0], [0], [1], [0, 0, 1, 1], [], []>} : vector<8x16xf32>, vector<16x512xf32>, vector<8x512xf32> -> vector<8x512xf32>
    %c0_42 = arith.constant 0 : index
    %c0_43 = arith.constant 0 : index
    %146 = vector.load %arg5[%c0_42, %c0_43] : memref<8x512xf32, #tpu.memory_space<vmem>>, vector<8x512xf32>
    tpu.vector_store %arg5[%c0_42, %c0_43], %145 {strides = array<i32>} : memref<8x512xf32, #tpu.memory_space<vmem>>, vector<8x512xf32>,
    %cst_44 = arith.constant dense<0.000000e+00> : vector<8x512xf32>
    %147 = tpu.matmul %144, %12, %cst_44 {dimension_numbers = #tpu.dot_dimension_numbers<[1], [0], [0], [1], [0, 0, 1, 1], [], []>} : vector<8x16xf32>, vector<16x512xf32>, vector<8x512xf32> -> vector<8x512xf32>
    %c0_45 = arith.constant 0 : index
    %c0_46 = arith.constant 0 : index
    %148 = vector.load %arg6[%c0_45, %c0_46] : memref<8x512xf32, #tpu.memory_space<vmem>>, vector<8x512xf32>
    tpu.vector_store %arg6[%c0_45, %c0_46], %147 {strides = array<i32>} : memref<8x512xf32, #tpu.memory_space<vmem>>, vector<8x512xf32>,
    return
  }
  func.func @transform_0(%arg0: i32, %arg1: memref<8xi32, #tpu.memory_space<smem>>, %arg2: memref<8xi32, #tpu.memory_space<smem>>) -> (i32, i32) {
    %c0_i32 = arith.constant 0 : i32
    %c0_i32_0 = arith.constant 0 : i32
    %c0_i32_1 = arith.constant 0 : i32
    return %c0_i32, %c0_i32_0 : i32, i32
  }
  func.func @transform_1(%arg0: i32, %arg1: memref<8xi32, #tpu.memory_space<smem>>, %arg2: memref<8xi32, #tpu.memory_space<smem>>) -> (i32, i32) {
    %c0_i32 = arith.constant 0 : i32
    %c0_i32_0 = arith.constant 0 : i32
    return %c0_i32, %arg0 : i32, i32
  }
  func.func @transform_2(%arg0: i32, %arg1: memref<8xi32, #tpu.memory_space<smem>>, %arg2: memref<8xi32, #tpu.memory_space<smem>>) -> (i32, i32) {
    %c0_i32 = arith.constant 0 : i32
    %c0_i32_0 = arith.constant 0 : i32
    return %c0_i32, %arg0 : i32, i32
  }
  func.func @transform_3(%arg0: i32, %arg1: memref<8xi32, #tpu.memory_space<smem>>, %arg2: memref<8xi32, #tpu.memory_space<smem>>) -> (i32, i32) {
    %c0_i32 = arith.constant 0 : i32
    %c0_i32_0 = arith.constant 0 : i32
    return %c0_i32, %arg0 : i32, i32
  }
}

</mosaic_0001>

<llo_original>
// kernel: messaging_forward.1
$region0: #{messaging_forward.1}
  #allocation0 [shape = 'u32[]', space=smem, size = 0x4, offset = 0x4, fixed_abs, tag = 'smem constant byte address 0x4 - core index']
  #allocation1 [shape = 'u32[144,128]{1,0:T(1,128)}', space=vmem, size = 0x12000, scoped, tag = 'internal scratch']
  #allocation2 [shape = 's32[1]{0}', space=sflag, size = 0x4, scoped, tag = 'scoped memory for messaging_forward.1']
  #allocation3 [shape = 'u8[512]{0}', space=smem, size = 0x200, scoped, tag = 'prefetched SMEM operand 0']
  #allocation4 [shape = 'u8[512]{0}', space=smem, size = 0x200, scoped, tag = 'prefetched SMEM operand 1']
  %s0 = inlined_call_operand.vmem [shape: s32[8], index: 0, kind: input, shape index: {}]
  %s1 = inlined_call_operand.vmem [shape: s32[8], index: 1, kind: input, shape index: {}]
  %s2 = inlined_call_operand.vmem [shape: f32[16,16], index: 2, kind: input, shape index: {}]
  %s3 = inlined_call_operand.vmem [shape: f32[16,1024], index: 3, kind: input, shape index: {}]
  %s4 = inlined_call_operand.hbm [shape: f32[8,1024], index: 4, kind: output, shape index: {0}]
  %s5 = inlined_call_operand.hbm [shape: f32[8,1024], index: 5, kind: output, shape index: {1}]
  %6 = xla_tuple %s4, %s5
  %s7 = sld [smem:[#allocation0]]
  $region72: #{messaging_forward.1} parent=0
    _
  %s9 = ssub.s32 1, %s7
  %s10 = scalar_select 0, %s9, %s7
  %s11 = sshll.u32 %s0, 4
  %s12 = int_to_ptr.vmem [resolvable:$true] %s11
  %14 = dma.vmem_to_smem %s12, 16, [#allocation3], [#allocation2]
  %s15 = sshll.u32 %s1, 4
  %s16 = int_to_ptr.vmem [resolvable:$true] %s15
  %18 = dma.vmem_to_smem %s16, 16, [#allocation4], [#allocation2]
  %19 = dma.done [#allocation2], 32
  %20 = sfence
  $region1: #{messaging_forward.1} parent=0
    #allocation5 [shape = 'u8[65536]{0}', space=vmem, size = 0x10000, scoped, tag = 'input window, operand 3']
    #allocation6 [shape = 'u8[32768]{0}', space=vmem, size = 0x8000, scoped, tag = 'output window, operand 0']
    #allocation7 [shape = 's32[2]{0}', space=sflag, size = 0x8, scoped, tag = 'scoped memory for messaging_forward.1']
    #allocation8 [shape = 'u8[32768]{0}', space=vmem, size = 0x8000, scoped, tag = 'output window, operand 1']
    #allocation9 [shape = 's32[2]{0}', space=sflag, size = 0x8, scoped, tag = 'scoped memory for messaging_forward.1']
    %21 = vsyncpa [#allocation7], 0
    %s22 = scalar_lea.sflag [#allocation7], 1
    %23 = vsyncpa %s22, 0
    %24 = vsyncpa [#allocation9], 0
    %s25 = scalar_lea.sflag [#allocation9], 1
    %26 = vsyncpa %s25, 0
    loop: start=0, step=1, limit=4
    $region2: #{messaging_forward.1} parent=1 // loop_pre_header
      _
    $region3: #{messaging_forward.1} parent=1 // loop_header
      %s28 = sphi 0, %s32
      %p29 = scmp.ge.s32.totalorder %s28, 4
      %s36 = sphi 0, %s36
      %s38 = sphi 0, %s36
      %s39 = sphi 0, %s38
      %s53 = sphi 0, %s39
      %s59 = sphi 0, %s61
      %s62 = sphi 0, %s59
      %s63 = sphi 0, %s62
      %s79 = sphi 0, %s63
      %s85 = sphi 0, %s87
      %s88 = sphi 0, %s85
      %s89 = sphi 0, %s88
      %s105 = sphi 0, %s89
      %s111 = sphi 0, %s113
      %s114 = sphi 0, %s111
      %s115 = sphi 0, %s114
      %s131 = sphi 0, %s115
    $region4: #{messaging_forward.1} parent=1 // loop_header_branch
      %31 = sbr.rel (%p29) target = $region8
    $region5: #{messaging_forward.1} parent=1 // loop_body
      %s33 = ssub.s32 %s28, 1
      %s34 = ssub.s32 %s28, 2
      %s35 = sadd.s32 %s28, 1
      %s37 = sadd.s32 %s36, 1
      %p40 = scmp.eq.s32.totalorder %s28, 1
      %p41 = scmp.ne.s32.totalorder %s36, %s38
      %p42 = scmp.eq.s32.totalorder %s28, 0
      %p43 = por %p41, %p42
      %p44 = scmp.ne.s32.totalorder %s36, %s38
      %p45 = scmp.eq.s32.totalorder %s33, 1
      %p46 = por %p44, %p45
      %p47 = scmp.ne.s32.totalorder %s38, %s39
      %p48 = scmp.eq.s32.totalorder %s33, 0
      %p49 = por %p47, %p48
      %p50 = scmp.ne.s32.totalorder %s38, %s39
      %p51 = scmp.eq.s32.totalorder %s34, 1
      %p52 = por %p50, %p51
      %p54 = scmp.ne.s32.totalorder %s39, %s53
      %p55 = scmp.eq.s32.totalorder %s34, 0
      %p56 = por %p54, %p55
      %s57 = ssub.s32 %s28, %s35
      %p58 = scmp.eq.s32.totalorder %s57, 0
      %s60 = sadd.s32 %s59, 1
      %s61 = scalar_select %p58, %s59, %s60
      %p64 = pneg %p58
      %p65 = scmp.eq.s32.totalorder %s28, 1
      %p66 = por %p64, %p65
      %p67 = scmp.ne.s32.totalorder %s59, %s62
      %p68 = scmp.eq.s32.totalorder %s28, 0
      %p69 = por %p67, %p68
      %p70 = scmp.ne.s32.totalorder %s59, %s62
      %p71 = scmp.eq.s32.totalorder %s33, 1
      %p72 = por %p70, %p71
      %p73 = scmp.ne.s32.totalorder %s62, %s63
      %p74 = scmp.eq.s32.totalorder %s33, 0
      %p75 = por %p73, %p74
      %p76 = scmp.ne.s32.totalorder %s62, %s63
      %p77 = scmp.eq.s32.totalorder %s34, 1
      %p78 = por %p76, %p77
      %p80 = scmp.ne.s32.totalorder %s63, %s79
      %p81 = scmp.eq.s32.totalorder %s34, 0
      %p82 = por %p80, %p81
      %s83 = ssub.s32 %s28, %s35
      %p84 = scmp.eq.s32.totalorder %s83, 0
      %s86 = sadd.s32 %s85, 1
      %s87 = scalar_select %p84, %s85, %s86
      %p90 = pneg %p84
      %p91 = scmp.eq.s32.totalorder %s28, 1
      %p92 = por %p90, %p91
      %p93 = scmp.ne.s32.totalorder %s85, %s88
      %p94 = scmp.eq.s32.totalorder %s28, 0
      %p95 = por %p93, %p94
      %p96 = scmp.ne.s32.totalorder %s85, %s88
      %p97 = scmp.eq.s32.totalorder %s33, 1
      %p98 = por %p96, %p97
      %p99 = scmp.ne.s32.totalorder %s88, %s89
      %p100 = scmp.eq.s32.totalorder %s33, 0
      %p101 = por %p99, %p100
      %p102 = scmp.ne.s32.totalorder %s88, %s89
      %p103 = scmp.eq.s32.totalorder %s34, 1
      %p104 = por %p102, %p103
      %p106 = scmp.ne.s32.totalorder %s89, %s105
      %p107 = scmp.eq.s32.totalorder %s34, 0
      %p108 = por %p106, %p107
      %s109 = ssub.s32 %s28, %s35
      %p110 = scmp.eq.s32.totalorder %s109, 0
      %s112 = sadd.s32 %s111, 1
      %s113 = scalar_select %p110, %s111, %s112
      %p116 = pneg %p110
      %p117 = scmp.eq.s32.totalorder %s28, 1
      %p118 = por %p116, %p117
      %p119 = scmp.ne.s32.totalorder %s111, %s114
      %p120 = scmp.eq.s32.totalorder %s28, 0
      %p121 = por %p119, %p120
      %p122 = scmp.ne.s32.totalorder %s111, %s114
      %p123 = scmp.eq.s32.totalorder %s33, 1
      %p124 = por %p122, %p123
      %p125 = scmp.ne.s32.totalorder %s114, %s115
      %p126 = scmp.eq.s32.totalorder %s33, 0
      %p127 = por %p125, %p126
      %p128 = scmp.ne.s32.totalorder %s114, %s115
      %p129 = scmp.eq.s32.totalorder %s34, 1
      %p130 = por %p128, %p129
      %p132 = scmp.ne.s32.totalorder %s115, %s131
      %p133 = scmp.eq.s32.totalorder %s34, 0
      %p134 = por %p132, %p133
      %p135 = scmp.le.s32.totalorder 1, %s28
      %p136 = scmp.lt.s32.totalorder %s28, 3
      %p137 = pnand %p135, %p136
      %p138 = pneg %p137
      // Predicated region
      $region9: #{messaging_forward.1} parent=5 // pred_check
        _
      $region10: #{messaging_forward.1} parent=5 // pred_check_branch
        %140 = sbr.rel (%p137) target = $region12
      $region11: #{messaging_forward.1} parent=5 // pred_region
        %s141 = ssub.s32 %s28, 1
        // Predicated region
        $region13: #{messaging_forward.1} parent=11 // pred_check
          %p142 = pneg %p49
        $region14: #{messaging_forward.1} parent=11 // pred_check_branch
          %144 = sbr.rel (%p142) target = $region16
        $region15: #{messaging_forward.1} parent=11 // pred_region
          _
        $region16: #{messaging_forward.1} parent=11 // pred_fallthru
          _
      $region12: #{messaging_forward.1} parent=5 // pred_fallthru
        _
      %p145 = scmp.lt.s32.totalorder %s28, 2
      // Predicated region
      $region17: #{messaging_forward.1} parent=5 // pred_check
        %p146 = pneg %p145
      $region18: #{messaging_forward.1} parent=5 // pred_check_branch
        %148 = sbr.rel (%p146) target = $region20
      $region19: #{messaging_forward.1} parent=5 // pred_region
        // Predicated region
        $region21: #{messaging_forward.1} parent=19 // pred_check
          %p149 = pneg %p69
        $region22: #{messaging_forward.1} parent=19 // pred_check_branch
          %151 = sbr.rel (%p149) target = $region24
        $region23: #{messaging_forward.1} parent=19 // pred_region
          %s152 = sand.u32 %s59, 1
          %s153 = sand.u32 %s59, 1
          %s154 = smul.addr %s153, 64
          %s155 = scalar_lea.vmem [#allocation5], %s154
          %s156 = smul.u32 4, %s28
          %s157 = smul.addr %s156, 8
          %s158 = scalar_lea.vmem %s3, %s157
          // Predicated region
          $region25: #{messaging_forward.1} parent=23 // pred_check
            _
          $region26: #{messaging_forward.1} parent=23 // pred_check_branch
            %160 = sbr.rel (0) target = $region28
          $region27: #{messaging_forward.1} parent=23 // pred_region
            // Predicated region
            $region29: #{messaging_forward.1} parent=27 // pred_check
              _
            $region30: #{messaging_forward.1} parent=27 // pred_check_branch
              %162 = sbr.rel (0) target = $region32
            $region31: #{messaging_forward.1} parent=27 // pred_region
              loop: start=0, step=1, limit=1
              $region33: #{messaging_forward.1} parent=31 // loop_pre_header
                _
              $region34: #{messaging_forward.1} parent=31 // loop_header
                %s164 = sphi 0, %s168
                %p165 = scmp.ge.s32.totalorder %s164, 1
                %s169 = sphi %s158, %s158
                %s170 = sphi %s155, %s155
              $region35: #{messaging_forward.1} parent=31 // loop_header_branch
                %167 = sbr.rel (%p165) target = $region39
              $region36: #{messaging_forward.1} parent=31 // loop_body
                %v171 = vld [vmem:[%s169] sm:$0xff]
                %172 = vst [vmem:[%s170] sm:$0xff] %v171
                %v173 = vld [vmem:[%s169 + $0x8] sm:$0xff]
                %174 = vst [vmem:[%s170 + $0x8] sm:$0xff] %v173
                %v175 = vld [vmem:[%s169 + $0x10] sm:$0xff]
                %176 = vst [vmem:[%s170 + $0x10] sm:$0xff] %v175
                %v177 = vld [vmem:[%s169 + $0x18] sm:$0xff]
                %178 = vst [vmem:[%s170 + $0x18] sm:$0xff] %v177
                %v179 = vld [vmem:[%s169 + $0x40] sm:$0xff]
                %180 = vst [vmem:[%s170 + $0x20] sm:$0xff] %v179
                %v181 = vld [vmem:[%s169 + $0x48] sm:$0xff]
                %182 = vst [vmem:[%s170 + $0x28] sm:$0xff] %v181
                %v183 = vld [vmem:[%s169 + $0x50] sm:$0xff]
                %184 = vst [vmem:[%s170 + $0x30] sm:$0xff] %v183
                %v185 = vld [vmem:[%s169 + $0x58] sm:$0xff]
                %186 = vst [vmem:[%s170 + $0x38] sm:$0xff] %v185
              $region37: #{messaging_forward.1} parent=31 // loop_footer
                %s168 = sadd.s32 1, %s164
              $region38: #{messaging_forward.1} parent=31 // loop_footer_branch
                %163 = sbr.rel target = $region34
              $region39: #{messaging_forward.1} parent=31 // loop_exit
                _
            $region32: #{messaging_forward.1} parent=27 // pred_fallthru
              _
            // Predicated region
            $region40: #{messaging_forward.1} parent=27 // pred_check
              _
            $region41: #{messaging_forward.1} parent=27 // pred_check_branch
              %188 = sbr.rel target = $region43
            $region42: #{messaging_forward.1} parent=27 // pred_region
              _
            $region43: #{messaging_forward.1} parent=27 // pred_fallthru
              _
          $region28: #{messaging_forward.1} parent=23 // pred_fallthru
            _
          %189 = vnop
        $region24: #{messaging_forward.1} parent=19 // pred_fallthru
          _
      $region20: #{messaging_forward.1} parent=5 // pred_fallthru
        _
      %p190 = scmp.le.s32.totalorder 1, %s28
      %p191 = scmp.lt.s32.totalorder %s28, 3
      %p192 = pnand %p190, %p191
      %p193 = pneg %p192
      // Predicated region
      $region44: #{messaging_forward.1} parent=5 // pred_check
        _
      $region45: #{messaging_forward.1} parent=5 // pred_check_branch
        %195 = sbr.rel (%p192) target = $region47
      $region46: #{messaging_forward.1} parent=5 // pred_region
        %s196 = ssub.s32 %s28, 1
        %s197 = sand.u32 %s62, 1
        %s198 = sand.u32 %s62, 1
        %s199 = smul.addr %s198, 64
        %s200 = scalar_lea.vmem [#allocation5], %s199
        // Predicated region
        $region48: #{messaging_forward.1} parent=46 // pred_check
          %p201 = pneg %p75
        $region49: #{messaging_forward.1} parent=46 // pred_check_branch
          %203 = sbr.rel (%p201) target = $region51
        $region50: #{messaging_forward.1} parent=46 // pred_region
          _
        $region51: #{messaging_forward.1} parent=46 // pred_fallthru
          _
        %p204 = pneg %p49
        %p205 = pneg %p46
        %s206 = sand.u32 %s62, 1
        %s207 = sand.u32 %s62, 1
        %s208 = smul.addr %s207, 64
        %s209 = scalar_lea.vmem [#allocation5], %s208
        %p210 = pneg %p75
        %p211 = pneg %p72
        %p212 = pneg %p101
        %p213 = pneg %p98
        %s214 = sand.u32 %s88, 1
        %s215 = scalar_lea.sflag [#allocation7], %s214
        %s216 = sand.u32 %s88, 1
        %s217 = smul.addr %s216, 32
        %s218 = scalar_lea.vmem [#allocation6], %s217
        %p219 = pneg %p127
        %p220 = pneg %p124
        %s221 = sand.u32 %s114, 1
        %s222 = scalar_lea.sflag [#allocation9], %s221
        %s223 = sand.u32 %s114, 1
        %s224 = smul.addr %s223, 32
        %s225 = scalar_lea.vmem [#allocation8], %s224
        %s226 = smul.u32 4, %s33
        %s227 = smul.u32 4, %s33
        %s228 = smul.u32 4, %s33
        %v229 = vld [vmem:[%s2] sm:$0xff]
        %v230 = vld [vmem:[%s2 + $0x8] sm:$0xff]
        %v231 = vxor.u32 %v229, 2147483648
        %v232 = vxor.u32 %v230, 2147483648
        %v233 = vmul.f32 %v231, 1.442695
        %v234 = vpow.pop %v233
        %v235 = vmul.f32 %v232, 1.442695
        %v236 = vpow.pop %v235
        %v237 = vadd.f32 %v234, 1.0
        %v238 = vadd.f32 %v236, 1.0
        %v239 = vrcp.pop %v237
        %v240 = vmul.f32 1.0, %v239
        %v241 = vrcp.pop %v238
        %v242 = vmul.f32 1.0, %v241
        %v243 = vmul.f32 %v240, 0.5
        %v244 = vmul.f32 %v242, 0.5
        %vm245 = vcmask 130048
        %v247 = vsel %vm245, %v240, 0
        %v250 = vsel %vm245, %v242, 0
        %252 = vmatprep.subr.mxu0 0.0
        %253 = vmatpush1.msra.mxu0 %v240
        %254 = vmatprep.subr.mxu0 0.0
        %255 = vmatpush1.msra.mxu0 %v242
        %256 = vmatprep.subr.mxu0 0.0
        %257 = vmatpush1.msra.mxu0 0.0
        %258 = vmatprep.subr.mxu0 0.0
        %259 = vmatpush1.msra.mxu0 0.0
        %260 = vmatprep.subr.mxu0 0.0
        %261 = vmatpush1.msra.mxu0 0.0
        %262 = vmatprep.subr.mxu0 0.0
        %263 = vmatpush1.msra.mxu0 0.0
        %264 = vmatprep.subr.mxu0 0.0
        %265 = vmatpush1.msra.mxu0 0.0
        %266 = vmatprep.subr.mxu0 0.0
        %267 = vmatpush1.msra.mxu0 0.0
        %268 = vmatprep.subr.mxu0 0.0
        %269 = vmatpush1.msra.mxu0 0.0
        %270 = vmatprep.subr.mxu0 0.0
        %271 = vmatpush1.msra.mxu0 0.0
        %272 = vmatprep.subr.mxu0 0.0
        %273 = vmatpush1.msra.mxu0 0.0
        %274 = vmatprep.subr.mxu0 0.0
        %275 = vmatpush1.msra.mxu0 0.0
        %276 = vmatprep.subr.mxu0 0.0
        %277 = vmatpush1.msra.mxu0 0.0
        %278 = vmatprep.subr.mxu0 0.0
        %279 = vmatpush1.msra.mxu0 0.0
        %280 = vmatprep.subr.mxu0 0.0
        %281 = vmatpush1.msra.mxu0 0.0
        %282 = vmatprep.subr.mxu0 0.0
        %283 = vmatpush1.msra.mxu0 0.0
        %284 = vmatprep.subr.mxu0 0.0
        %285 = vmatpush1.msra.mxu0 0.0
        %286 = vmatprep.subr.mxu0 0.0
        %287 = vmatpush1.msra.mxu0 0.0
        %288 = vmatprep.subr.mxu0 0.0
        %289 = vmatpush1.msra.mxu0 0.0
        %290 = vmatprep.subr.mxu0 0.0
        %291 = vmatpush1.msra.mxu0 0.0
        %292 = vmatprep.subr.mxu0 0.0
        %293 = vmatpush1.msra.mxu0 0.0
        %294 = vmatprep.subr.mxu0 0.0
        %295 = vmatpush1.msra.mxu0 0.0
        %296 = vmatprep.subr.mxu0 0.0
        %297 = vmatpush1.msra.mxu0 0.0
        %298 = vmatprep.subr.mxu0 0.0
        %299 = vmatpush1.msra.mxu0 0.0
        %300 = vmatprep.subr.mxu0 0.0
        %301 = vmatpush1.msra.mxu0 0.0
        %302 = vmatprep.subr.mxu0 0.0
        %303 = vmatpush1.msra.mxu0 0.0
        %304 = vmatprep.subr.mxu0 0.0
        %305 = vmatpush1.msra.mxu0 0.0
        %306 = vmatprep.subr.mxu0 0.0
        %307 = vmatpush1.msra.mxu0 0.0
        %308 = vmatprep.subr.mxu0 0.0
        %309 = vmatpush1.msra.mxu0 0.0
        %310 = vmatprep.subr.mxu0 0.0
        %311 = vmatpush1.msra.mxu0 0.0
        %312 = vmatprep.subr.mxu0 0.0
        %313 = vmatpush1.msra.mxu0 0.0
        %314 = vmatprep.subr.mxu0 0.0
        %315 = vmatpush1.msra.mxu0 0.0
        %316 = vmatprep.mubr.f32.mxu0 0.0
        %317 = vmatmul.mubr.f32.gmra.mrb[0].mxu0 %v247
        %v318 = vpop.f32.mrb[0].mxu0
        %v319 = vadd.f32 %v243, %v318
        %v320 = vpop.f32.mrb[0].mxu0
        %321 = vmatprep.mubr.f32.mxu0 0.0
        %322 = vmatmul.mubr.f32.gmra.mrb[0].mxu0 %v250
        %v323 = vpop.f32.mrb[0].mxu0
        %v324 = vadd.f32 %v244, %v323
        %v325 = vpop.f32.mrb[0].mxu0
        %326 = vdwg.mxu0
        %v327 = vld [vmem:[%s200] sm:$0xff]
        %v328 = vld [vmem:[%s200 + $0x8] sm:$0xff]
        %v329 = vld [vmem:[%s200 + $0x10] sm:$0xff]
        %v330 = vld [vmem:[%s200 + $0x18] sm:$0xff]
        %v331 = vld [vmem:[%s200 + $0x20] sm:$0xff]
        %v332 = vld [vmem:[%s200 + $0x28] sm:$0xff]
        %v333 = vld [vmem:[%s200 + $0x30] sm:$0xff]
        %v334 = vld [vmem:[%s200 + $0x38] sm:$0xff]
        %v336 = vsel %vm245, %v319, 0
        %v339 = vsel %vm245, %v324, 0
        %341 = vmatprep.subr.mxu0 %v328
        %342 = vmatpush1.msra.mxu0 %v327
        %343 = vmatprep.subr.mxu0 %v332
        %344 = vmatpush1.msra.mxu0 %v331
        %345 = vmatprep.subr.mxu0 0.0
        %346 = vmatpush1.msra.mxu0 0.0
        %347 = vmatprep.subr.mxu0 0.0
        %348 = vmatpush1.msra.mxu0 0.0
        %349 = vmatprep.subr.mxu0 0.0
        %350 = vmatpush1.msra.mxu0 0.0
        %351 = vmatprep.subr.mxu0 0.0
        %352 = vmatpush1.msra.mxu0 0.0
        %353 = vmatprep.subr.mxu0 0.0
        %354 = vmatpush1.msra.mxu0 0.0
        %355 = vmatprep.subr.mxu0 0.0
        %356 = vmatpush1.msra.mxu0 0.0
        %357 = vmatprep.subr.mxu0 0.0
        %358 = vmatpush1.msra.mxu0 0.0
        %359 = vmatprep.subr.mxu0 0.0
        %360 = vmatpush1.msra.mxu0 0.0
        %361 = vmatprep.subr.mxu0 0.0
        %362 = vmatpush1.msra.mxu0 0.0
        %363 = vmatprep.subr.mxu0 0.0
        %364 = vmatpush1.msra.mxu0 0.0
        %365 = vmatprep.subr.mxu0 0.0
        %366 = vmatpush1.msra.mxu0 0.0
        %367 = vmatprep.subr.mxu0 0.0
        %368 = vmatpush1.msra.mxu0 0.0
        %369 = vmatprep.subr.mxu0 0.0
        %370 = vmatpush1.msra.mxu0 0.0
        %371 = vmatprep.subr.mxu0 0.0
        %372 = vmatpush1.msra.mxu0 0.0
        %373 = vmatprep.subr.mxu0 0.0
        %374 = vmatpush1.msra.mxu0 0.0
        %375 = vmatprep.subr.mxu0 0.0
        %376 = vmatpush1.msra.mxu0 0.0
        %377 = vmatprep.subr.mxu0 0.0
        %378 = vmatpush1.msra.mxu0 0.0
        %379 = vmatprep.subr.mxu0 0.0
        %380 = vmatpush1.msra.mxu0 0.0
        %381 = vmatprep.subr.mxu0 0.0
        %382 = vmatpush1.msra.mxu0 0.0
        %383 = vmatprep.subr.mxu0 0.0
        %384 = vmatpush1.msra.mxu0 0.0
        %385 = vmatprep.subr.mxu0 0.0
        %386 = vmatpush1.msra.mxu0 0.0
        %387 = vmatprep.subr.mxu0 0.0
        %388 = vmatpush1.msra.mxu0 0.0
        %389 = vmatprep.subr.mxu0 0.0
        %390 = vmatpush1.msra.mxu0 0.0
        %391 = vmatprep.subr.mxu0 0.0
        %392 = vmatpush1.msra.mxu0 0.0
        %393 = vmatprep.subr.mxu0 0.0
        %394 = vmatpush1.msra.mxu0 0.0
        %395 = vmatprep.subr.mxu0 0.0
        %396 = vmatpush1.msra.mxu0 0.0
        %397 = vmatprep.subr.mxu0 0.0
        %398 = vmatpush1.msra.mxu0 0.0
        %399 = vmatprep.subr.mxu0 0.0
        %400 = vmatpush1.msra.mxu0 0.0
        %401 = vmatprep.subr.mxu0 0.0
        %402 = vmatpush1.msra.mxu0 0.0
        %403 = vmatprep.subr.mxu0 0.0
        %404 = vmatpush1.msra.mxu0 0.0
        %405 = vmatprep.mubr.f32.mxu0 0.0
        %406 = vmatmul.mubr.f32.gmra.mrb[0].mxu0 %v336
        %v407 = vpop.f32.mrb[0].mxu0
        %v408 = vadd.f32 %v327, %v407
        %v409 = vpop.f32.mrb[0].mxu0
        %v410 = vadd.f32 %v328, %v409
        %411 = vmatprep.mubr.f32.mxu0 0.0
        %412 = vmatmul.mubr.f32.gmra.mrb[0].mxu0 %v339
        %v413 = vpop.f32.mrb[0].mxu0
        %v414 = vadd.f32 %v331, %v413
        %v415 = vpop.f32.mrb[0].mxu0
        %v416 = vadd.f32 %v332, %v415
        %417 = vdwg.mxu0
        %418 = vmatprep.subr.mxu0 %v330
        %419 = vmatpush1.msra.mxu0 %v329
        %420 = vmatprep.subr.mxu0 %v334
        %421 = vmatpush1.msra.mxu0 %v333
        %422 = vmatprep.subr.mxu0 0.0
        %423 = vmatpush1.msra.mxu0 0.0
        %424 = vmatprep.subr.mxu0 0.0
        %425 = vmatpush1.msra.mxu0 0.0
        %426 = vmatprep.subr.mxu0 0.0
        %427 = vmatpush1.msra.mxu0 0.0
        %428 = vmatprep.subr.mxu0 0.0
        %429 = vmatpush1.msra.mxu0 0.0
        %430 = vmatprep.subr.mxu0 0.0
        %431 = vmatpush1.msra.mxu0 0.0
        %432 = vmatprep.subr.mxu0 0.0
        %433 = vmatpush1.msra.mxu0 0.0
        %434 = vmatprep.subr.mxu0 0.0
        %435 = vmatpush1.msra.mxu0 0.0
        %436 = vmatprep.subr.mxu0 0.0
        %437 = vmatpush1.msra.mxu0 0.0
        %438 = vmatprep.subr.mxu0 0.0
        %439 = vmatpush1.msra.mxu0 0.0
        %440 = vmatprep.subr.mxu0 0.0
        %441 = vmatpush1.msra.mxu0 0.0
        %442 = vmatprep.subr.mxu0 0.0
        %443 = vmatpush1.msra.mxu0 0.0
        %444 = vmatprep.subr.mxu0 0.0
        %445 = vmatpush1.msra.mxu0 0.0
        %446 = vmatprep.subr.mxu0 0.0
        %447 = vmatpush1.msra.mxu0 0.0
        %448 = vmatprep.subr.mxu0 0.0
        %449 = vmatpush1.msra.mxu0 0.0
        %450 = vmatprep.subr.mxu0 0.0
        %451 = vmatpush1.msra.mxu0 0.0
        %452 = vmatprep.subr.mxu0 0.0
        %453 = vmatpush1.msra.mxu0 0.0
        %454 = vmatprep.subr.mxu0 0.0
        %455 = vmatpush1.msra.mxu0 0.0
        %456 = vmatprep.subr.mxu0 0.0
        %457 = vmatpush1.msra.mxu0 0.0
        %458 = vmatprep.subr.mxu0 0.0
        %459 = vmatpush1.msra.mxu0 0.0
        %460 = vmatprep.subr.mxu0 0.0
        %461 = vmatpush1.msra.mxu0 0.0
        %462 = vmatprep.subr.mxu0 0.0
        %463 = vmatpush1.msra.mxu0 0.0
        %464 = vmatprep.subr.mxu0 0.0
        %465 = vmatpush1.msra.mxu0 0.0
        %466 = vmatprep.subr.mxu0 0.0
        %467 = vmatpush1.msra.mxu0 0.0
        %468 = vmatprep.subr.mxu0 0.0
        %469 = vmatpush1.msra.mxu0 0.0
        %470 = vmatprep.subr.mxu0 0.0
        %471 = vmatpush1.msra.mxu0 0.0
        %472 = vmatprep.subr.mxu0 0.0
        %473 = vmatpush1.msra.mxu0 0.0
        %474 = vmatprep.subr.mxu0 0.0
        %475 = vmatpush1.msra.mxu0 0.0
        %476 = vmatprep.subr.mxu0 0.0
        %477 = vmatpush1.msra.mxu0 0.0
        %478 = vmatprep.subr.mxu0 0.0
        %479 = vmatpush1.msra.mxu0 0.0
        %480 = vmatprep.subr.mxu0 0.0
        %481 = vmatpush1.msra.mxu0 0.0
        %482 = vmatprep.mubr.f32.mxu0 0.0
        %483 = vmatmul.mubr.f32.gmra.mrb[0].mxu0 %v336
        %v484 = vpop.f32.mrb[0].mxu0
        %v485 = vadd.f32 %v329, %v484
        %v486 = vpop.f32.mrb[0].mxu0
        %v487 = vadd.f32 %v330, %v486
        %488 = vmatprep.mubr.f32.mxu0 0.0
        %489 = vmatmul.mubr.f32.gmra.mrb[0].mxu0 %v339
        %v490 = vpop.f32.mrb[0].mxu0
        %v491 = vadd.f32 %v333, %v490
        %v492 = vpop.f32.mrb[0].mxu0
        %v493 = vadd.f32 %v334, %v492
        %494 = vdwg.mxu0
        %v495 = vlaneseq
        %v496 = vshrl.u32 %v495, 7
        %v497 = vlaneseq
        %v498 = vand.u32 %v497, 127
        %vm499 = vcmp.eq.s32.totalorder %v496, 0
        %s500 = sld [smem:[#allocation3]]
        %v501 = vstv %s500
        %vm502 = vcmp.eq.s32.totalorder %v498, %v501
        %vm503 = vmand %vm499, %vm502
        %v504 = vsel %vm503, 1.0, 0.0
        %s505 = sld [smem:[#allocation4]]
        %v506 = vstv %s505
        %vm507 = vcmp.eq.s32.totalorder %v498, %v506
        %vm508 = vmand %vm499, %vm507
        %v509 = vsel %vm508, 1.0, 0.0
        %vm510 = vcmp.eq.s32.totalorder %v496, 1
        %s511 = sld [smem:[#allocation3 + $0x1]]
        %v512 = vstv %s511
        %vm513 = vcmp.eq.s32.totalorder %v498, %v512
        %vm514 = vmand %vm510, %vm513
        %v515 = vsel %vm514, 1.0, %v504
        %s516 = sld [smem:[#allocation4 + $0x1]]
        %v517 = vstv %s516
        %vm518 = vcmp.eq.s32.totalorder %v498, %v517
        %vm519 = vmand %vm510, %vm518
        %v520 = vsel %vm519, 1.0, %v509
        %vm521 = vcmp.eq.s32.totalorder %v496, 2
        %s522 = sld [smem:[#allocation3 + $0x2]]
        %v523 = vstv %s522
        %vm524 = vcmp.eq.s32.totalorder %v498, %v523
        %vm525 = vmand %vm521, %vm524
        %v526 = vsel %vm525, 1.0, %v515
        %s527 = sld [smem:[#allocation4 + $0x2]]
        %v528 = vstv %s527
        %vm529 = vcmp.eq.s32.totalorder %v498, %v528
        %vm530 = vmand %vm521, %vm529
        %v531 = vsel %vm530, 1.0, %v520
        %vm532 = vcmp.eq.s32.totalorder %v496, 3
        %s533 = sld [smem:[#allocation3 + $0x3]]
        %v534 = vstv %s533
        %vm535 = vcmp.eq.s32.totalorder %v498, %v534
        %vm536 = vmand %vm532, %vm535
        %v537 = vsel %vm536, 1.0, %v526
        %s538 = sld [smem:[#allocation4 + $0x3]]
        %v539 = vstv %s538
        %vm540 = vcmp.eq.s32.totalorder %v498, %v539
        %vm541 = vmand %vm532, %vm540
        %v542 = vsel %vm541, 1.0, %v531
        %vm543 = vcmp.eq.s32.totalorder %v496, 4
        %s544 = sld [smem:[#allocation3 + $0x4]]
        %v545 = vstv %s544
        %vm546 = vcmp.eq.s32.totalorder %v498, %v545
        %vm547 = vmand %vm543, %vm546
        %v548 = vsel %vm547, 1.0, %v537
        %s549 = sld [smem:[#allocation4 + $0x4]]
        %v550 = vstv %s549
        %vm551 = vcmp.eq.s32.totalorder %v498, %v550
        %vm552 = vmand %vm543, %vm551
        %v553 = vsel %vm552, 1.0, %v542
        %vm554 = vcmp.eq.s32.totalorder %v496, 5
        %s555 = sld [smem:[#allocation3 + $0x5]]
        %v556 = vstv %s555
        %vm557 = vcmp.eq.s32.totalorder %v498, %v556
        %vm558 = vmand %vm554, %vm557
        %v559 = vsel %vm558, 1.0, %v548
        %s560 = sld [smem:[#allocation4 + $0x5]]
        %v561 = vstv %s560
        %vm562 = vcmp.eq.s32.totalorder %v498, %v561
        %vm563 = vmand %vm554, %vm562
        %v564 = vsel %vm563, 1.0, %v553
        %vm565 = vcmp.eq.s32.totalorder %v496, 6
        %s566 = sld [smem:[#allocation3 + $0x6]]
        %v567 = vstv %s566
        %vm568 = vcmp.eq.s32.totalorder %v498, %v567
        %vm569 = vmand %vm565, %vm568
        %v570 = vsel %vm569, 1.0, %v559
        %s571 = sld [smem:[#allocation4 + $0x6]]
        %v572 = vstv %s571
        %vm573 = vcmp.eq.s32.totalorder %v498, %v572
        %vm574 = vmand %vm565, %vm573
        %v575 = vsel %vm574, 1.0, %v564
        %vm576 = vcmp.eq.s32.totalorder %v496, 7
        %s577 = sld [smem:[#allocation3 + $0x7]]
        %v578 = vstv %s577
        %vm579 = vcmp.eq.s32.totalorder %v498, %v578
        %vm580 = vmand %vm576, %vm579
        %v581 = vsel %vm580, 1.0, %v570
        %s582 = sld [smem:[#allocation4 + $0x7]]
        %v583 = vstv %s582
        %vm584 = vcmp.eq.s32.totalorder %v498, %v583
        %vm585 = vmand %vm576, %vm584
        %v586 = vsel %vm585, 1.0, %v575
        %v588 = vsel %vm245, %v581, 0
        %590 = vmatprep.subr.mxu0 %v410
        %591 = vmatpush1.msra.mxu0 %v408
        %592 = vmatprep.subr.mxu0 %v416
        %593 = vmatpush1.msra.mxu0 %v414
        %594 = vmatprep.subr.mxu0 0.0
        %595 = vmatpush1.msra.mxu0 0.0
        %596 = vmatprep.subr.mxu0 0.0
        %597 = vmatpush1.msra.mxu0 0.0
        %598 = vmatprep.subr.mxu0 0.0
        %599 = vmatpush1.msra.mxu0 0.0
        %600 = vmatprep.subr.mxu0 0.0
        %601 = vmatpush1.msra.mxu0 0.0
        %602 = vmatprep.subr.mxu0 0.0
        %603 = vmatpush1.msra.mxu0 0.0
        %604 = vmatprep.subr.mxu0 0.0
        %605 = vmatpush1.msra.mxu0 0.0
        %606 = vmatprep.subr.mxu0 0.0
        %607 = vmatpush1.msra.mxu0 0.0
        %608 = vmatprep.subr.mxu0 0.0
        %609 = vmatpush1.msra.mxu0 0.0
        %610 = vmatprep.subr.mxu0 0.0
        %611 = vmatpush1.msra.mxu0 0.0
        %612 = vmatprep.subr.mxu0 0.0
        %613 = vmatpush1.msra.mxu0 0.0
        %614 = vmatprep.subr.mxu0 0.0
        %615 = vmatpush1.msra.mxu0 0.0
        %616 = vmatprep.subr.mxu0 0.0
        %617 = vmatpush1.msra.mxu0 0.0
        %618 = vmatprep.subr.mxu0 0.0
        %619 = vmatpush1.msra.mxu0 0.0
        %620 = vmatprep.subr.mxu0 0.0
        %621 = vmatpush1.msra.mxu0 0.0
        %622 = vmatprep.subr.mxu0 0.0
        %623 = vmatpush1.msra.mxu0 0.0
        %624 = vmatprep.subr.mxu0 0.0
        %625 = vmatpush1.msra.mxu0 0.0
        %626 = vmatprep.subr.mxu0 0.0
        %627 = vmatpush1.msra.mxu0 0.0
        %628 = vmatprep.subr.mxu0 0.0
        %629 = vmatpush1.msra.mxu0 0.0
        %630 = vmatprep.subr.mxu0 0.0
        %631 = vmatpush1.msra.mxu0 0.0
        %632 = vmatprep.subr.mxu0 0.0
        %633 = vmatpush1.msra.mxu0 0.0
        %634 = vmatprep.subr.mxu0 0.0
        %635 = vmatpush1.msra.mxu0 0.0
        %636 = vmatprep.subr.mxu0 0.0
        %637 = vmatpush1.msra.mxu0 0.0
        %638 = vmatprep.subr.mxu0 0.0
        %639 = vmatpush1.msra.mxu0 0.0
        %640 = vmatprep.subr.mxu0 0.0
        %641 = vmatpush1.msra.mxu0 0.0
        %642 = vmatprep.subr.mxu0 0.0
        %643 = vmatpush1.msra.mxu0 0.0
        %644 = vmatprep.subr.mxu0 0.0
        %645 = vmatpush1.msra.mxu0 0.0
        %646 = vmatprep.subr.mxu0 0.0
        %647 = vmatpush1.msra.mxu0 0.0
        %648 = vmatprep.subr.mxu0 0.0
        %649 = vmatpush1.msra.mxu0 0.0
        %650 = vmatprep.subr.mxu0 0.0
        %651 = vmatpush1.msra.mxu0 0.0
        %652 = vmatprep.subr.mxu0 0.0
        %653 = vmatpush1.msra.mxu0 0.0
        %654 = vmatprep.mubr.f32.mxu0 0.0
        %655 = vmatmul.mubr.f32.gmra.mrb[0].mxu0 %v588
        %v656 = vpop.f32.mrb[0].mxu0
        %v657 = vadd.f32 0.0, %v656
        %v658 = vpop.f32.mrb[0].mxu0
        %v659 = vadd.f32 0.0, %v658
        %660 = vdwg.mxu0
        %661 = vmatprep.subr.mxu0 %v487
        %662 = vmatpush1.msra.mxu0 %v485
        %663 = vmatprep.subr.mxu0 %v493
        %664 = vmatpush1.msra.mxu0 %v491
        %665 = vmatprep.subr.mxu0 0.0
        %666 = vmatpush1.msra.mxu0 0.0
        %667 = vmatprep.subr.mxu0 0.0
        %668 = vmatpush1.msra.mxu0 0.0
        %669 = vmatprep.subr.mxu0 0.0
        %670 = vmatpush1.msra.mxu0 0.0
        %671 = vmatprep.subr.mxu0 0.0
        %672 = vmatpush1.msra.mxu0 0.0
        %673 = vmatprep.subr.mxu0 0.0
        %674 = vmatpush1.msra.mxu0 0.0
        %675 = vmatprep.subr.mxu0 0.0
        %676 = vmatpush1.msra.mxu0 0.0
        %677 = vmatprep.subr.mxu0 0.0
        %678 = vmatpush1.msra.mxu0 0.0
        %679 = vmatprep.subr.mxu0 0.0
        %680 = vmatpush1.msra.mxu0 0.0
        %681 = vmatprep.subr.mxu0 0.0
        %682 = vmatpush1.msra.mxu0 0.0
        %683 = vmatprep.subr.mxu0 0.0
        %684 = vmatpush1.msra.mxu0 0.0
        %685 = vmatprep.subr.mxu0 0.0
        %686 = vmatpush1.msra.mxu0 0.0
        %687 = vmatprep.subr.mxu0 0.0
        %688 = vmatpush1.msra.mxu0 0.0
        %689 = vmatprep.subr.mxu0 0.0
        %690 = vmatpush1.msra.mxu0 0.0
        %691 = vmatprep.subr.mxu0 0.0
        %692 = vmatpush1.msra.mxu0 0.0
        %693 = vmatprep.subr.mxu0 0.0
        %694 = vmatpush1.msra.mxu0 0.0
        %695 = vmatprep.subr.mxu0 0.0
        %696 = vmatpush1.msra.mxu0 0.0
        %697 = vmatprep.subr.mxu0 0.0
        %698 = vmatpush1.msra.mxu0 0.0
        %699 = vmatprep.subr.mxu0 0.0
        %700 = vmatpush1.msra.mxu0 0.0
        %701 = vmatprep.subr.mxu0 0.0
        %702 = vmatpush1.msra.mxu0 0.0
        %703 = vmatprep.subr.mxu0 0.0
        %704 = vmatpush1.msra.mxu0 0.0
        %705 = vmatprep.subr.mxu0 0.0
        %706 = vmatpush1.msra.mxu0 0.0
        %707 = vmatprep.subr.mxu0 0.0
        %708 = vmatpush1.msra.mxu0 0.0
        %709 = vmatprep.subr.mxu0 0.0
        %710 = vmatpush1.msra.mxu0 0.0
        %711 = vmatprep.subr.mxu0 0.0
        %712 = vmatpush1.msra.mxu0 0.0
        %713 = vmatprep.subr.mxu0 0.0
        %714 = vmatpush1.msra.mxu0 0.0
        %715 = vmatprep.subr.mxu0 0.0
        %716 = vmatpush1.msra.mxu0 0.0
        %717 = vmatprep.subr.mxu0 0.0
        %718 = vmatpush1.msra.mxu0 0.0
        %719 = vmatprep.subr.mxu0 0.0
        %720 = vmatpush1.msra.mxu0 0.0
        %721 = vmatprep.subr.mxu0 0.0
        %722 = vmatpush1.msra.mxu0 0.0
        %723 = vmatprep.subr.mxu0 0.0
        %724 = vmatpush1.msra.mxu0 0.0
        %725 = vmatprep.mubr.f32.mxu0 0.0
        %726 = vmatmul.mubr.f32.gmra.mrb[0].mxu0 %v588
        %v727 = vpop.f32.mrb[0].mxu0
        %v728 = vadd.f32 0.0, %v727
        %v729 = vpop.f32.mrb[0].mxu0
        %v730 = vadd.f32 0.0, %v729
        %731 = vdwg.mxu0
        %732 = vst [vmem:[%s218] sm:$0xff] %v657
        %733 = vst [vmem:[%s218 + $0x8] sm:$0xff] %v659
        %734 = vst [vmem:[%s218 + $0x10] sm:$0xff] %v728
        %735 = vst [vmem:[%s218 + $0x18] sm:$0xff] %v730
        %v737 = vsel %vm245, %v586, 0
        %739 = vmatprep.subr.mxu0 %v410
        %740 = vmatpush1.msra.mxu0 %v408
        %741 = vmatprep.subr.mxu0 %v416
        %742 = vmatpush1.msra.mxu0 %v414
        %743 = vmatprep.subr.mxu0 0.0
        %744 = vmatpush1.msra.mxu0 0.0
        %745 = vmatprep.subr.mxu0 0.0
        %746 = vmatpush1.msra.mxu0 0.0
        %747 = vmatprep.subr.mxu0 0.0
        %748 = vmatpush1.msra.mxu0 0.0
        %749 = vmatprep.subr.mxu0 0.0
        %750 = vmatpush1.msra.mxu0 0.0
        %751 = vmatprep.subr.mxu0 0.0
        %752 = vmatpush1.msra.mxu0 0.0
        %753 = vmatprep.subr.mxu0 0.0
        %754 = vmatpush1.msra.mxu0 0.0
        %755 = vmatprep.subr.mxu0 0.0
        %756 = vmatpush1.msra.mxu0 0.0
        %757 = vmatprep.subr.mxu0 0.0
        %758 = vmatpush1.msra.mxu0 0.0
        %759 = vmatprep.subr.mxu0 0.0
        %760 = vmatpush1.msra.mxu0 0.0
        %761 = vmatprep.subr.mxu0 0.0
        %762 = vmatpush1.msra.mxu0 0.0
        %763 = vmatprep.subr.mxu0 0.0
        %764 = vmatpush1.msra.mxu0 0.0
        %765 = vmatprep.subr.mxu0 0.0
        %766 = vmatpush1.msra.mxu0 0.0
        %767 = vmatprep.subr.mxu0 0.0
        %768 = vmatpush1.msra.mxu0 0.0
        %769 = vmatprep.subr.mxu0 0.0
        %770 = vmatpush1.msra.mxu0 0.0
        %771 = vmatprep.subr.mxu0 0.0
        %772 = vmatpush1.msra.mxu0 0.0
        %773 = vmatprep.subr.mxu0 0.0
        %774 = vmatpush1.msra.mxu0 0.0
        %775 = vmatprep.subr.mxu0 0.0
        %776 = vmatpush1.msra.mxu0 0.0
        %777 = vmatprep.subr.mxu0 0.0
        %778 = vmatpush1.msra.mxu0 0.0
        %779 = vmatprep.subr.mxu0 0.0
        %780 = vmatpush1.msra.mxu0 0.0
        %781 = vmatprep.subr.mxu0 0.0
        %782 = vmatpush1.msra.mxu0 0.0
        %783 = vmatprep.subr.mxu0 0.0
        %784 = vmatpush1.msra.mxu0 0.0
        %785 = vmatprep.subr.mxu0 0.0
        %786 = vmatpush1.msra.mxu0 0.0
        %787 = vmatprep.subr.mxu0 0.0
        %788 = vmatpush1.msra.mxu0 0.0
        %789 = vmatprep.subr.mxu0 0.0
        %790 = vmatpush1.msra.mxu0 0.0
        %791 = vmatprep.subr.mxu0 0.0
        %792 = vmatpush1.msra.mxu0 0.0
        %793 = vmatprep.subr.mxu0 0.0
        %794 = vmatpush1.msra.mxu0 0.0
        %795 = vmatprep.subr.mxu0 0.0
        %796 = vmatpush1.msra.mxu0 0.0
        %797 = vmatprep.subr.mxu0 0.0
        %798 = vmatpush1.msra.mxu0 0.0
        %799 = vmatprep.subr.mxu0 0.0
        %800 = vmatpush1.msra.mxu0 0.0
        %801 = vmatprep.subr.mxu0 0.0
        %802 = vmatpush1.msra.mxu0 0.0
        %803 = vmatprep.mubr.f32.mxu0 0.0
        %804 = vmatmul.mubr.f32.gmra.mrb[0].mxu0 %v737
        %v805 = vpop.f32.mrb[0].mxu0
        %v806 = vadd.f32 0.0, %v805
        %v807 = vpop.f32.mrb[0].mxu0
        %v808 = vadd.f32 0.0, %v807
        %809 = vdwg.mxu0
        %810 = vmatprep.subr.mxu0 %v487
        %811 = vmatpush1.msra.mxu0 %v485
        %812 = vmatprep.subr.mxu0 %v493
        %813 = vmatpush1.msra.mxu0 %v491
        %814 = vmatprep.subr.mxu0 0.0
        %815 = vmatpush1.msra.mxu0 0.0
        %816 = vmatprep.subr.mxu0 0.0
        %817 = vmatpush1.msra.mxu0 0.0
        %818 = vmatprep.subr.mxu0 0.0
        %819 = vmatpush1.msra.mxu0 0.0
        %820 = vmatprep.subr.mxu0 0.0
        %821 = vmatpush1.msra.mxu0 0.0
        %822 = vmatprep.subr.mxu0 0.0
        %823 = vmatpush1.msra.mxu0 0.0
        %824 = vmatprep.subr.mxu0 0.0
        %825 = vmatpush1.msra.mxu0 0.0
        %826 = vmatprep.subr.mxu0 0.0
        %827 = vmatpush1.msra.mxu0 0.0
        %828 = vmatprep.subr.mxu0 0.0
        %829 = vmatpush1.msra.mxu0 0.0
        %830 = vmatprep.subr.mxu0 0.0
        %831 = vmatpush1.msra.mxu0 0.0
        %832 = vmatprep.subr.mxu0 0.0
        %833 = vmatpush1.msra.mxu0 0.0
        %834 = vmatprep.subr.mxu0 0.0
        %835 = vmatpush1.msra.mxu0 0.0
        %836 = vmatprep.subr.mxu0 0.0
        %837 = vmatpush1.msra.mxu0 0.0
        %838 = vmatprep.subr.mxu0 0.0
        %839 = vmatpush1.msra.mxu0 0.0
        %840 = vmatprep.subr.mxu0 0.0
        %841 = vmatpush1.msra.mxu0 0.0
        %842 = vmatprep.subr.mxu0 0.0
        %843 = vmatpush1.msra.mxu0 0.0
        %844 = vmatprep.subr.mxu0 0.0
        %845 = vmatpush1.msra.mxu0 0.0
        %846 = vmatprep.subr.mxu0 0.0
        %847 = vmatpush1.msra.mxu0 0.0
        %848 = vmatprep.subr.mxu0 0.0
        %849 = vmatpush1.msra.mxu0 0.0
        %850 = vmatprep.subr.mxu0 0.0
        %851 = vmatpush1.msra.mxu0 0.0
        %852 = vmatprep.subr.mxu0 0.0
        %853 = vmatpush1.msra.mxu0 0.0
        %854 = vmatprep.subr.mxu0 0.0
        %855 = vmatpush1.msra.mxu0 0.0
        %856 = vmatprep.subr.mxu0 0.0
        %857 = vmatpush1.msra.mxu0 0.0
        %858 = vmatprep.subr.mxu0 0.0
        %859 = vmatpush1.msra.mxu0 0.0
        %860 = vmatprep.subr.mxu0 0.0
        %861 = vmatpush1.msra.mxu0 0.0
        %862 = vmatprep.subr.mxu0 0.0
        %863 = vmatpush1.msra.mxu0 0.0
        %864 = vmatprep.subr.mxu0 0.0
        %865 = vmatpush1.msra.mxu0 0.0
        %866 = vmatprep.subr.mxu0 0.0
        %867 = vmatpush1.msra.mxu0 0.0
        %868 = vmatprep.subr.mxu0 0.0
        %869 = vmatpush1.msra.mxu0 0.0
        %870 = vmatprep.subr.mxu0 0.0
        %871 = vmatpush1.msra.mxu0 0.0
        %872 = vmatprep.subr.mxu0 0.0
        %873 = vmatpush1.msra.mxu0 0.0
        %874 = vmatprep.mubr.f32.mxu0 0.0
        %875 = vmatmul.mubr.f32.gmra.mrb[0].mxu0 %v737
        %v876 = vpop.f32.mrb[0].mxu0
        %v877 = vadd.f32 0.0, %v876
        %v878 = vpop.f32.mrb[0].mxu0
        %v879 = vadd.f32 0.0, %v878
        %880 = vdwg.mxu0
        %881 = vst [vmem:[%s225] sm:$0xff] %v806
        %882 = vst [vmem:[%s225 + $0x8] sm:$0xff] %v808
        %883 = vst [vmem:[%s225 + $0x10] sm:$0xff] %v877
        %884 = vst [vmem:[%s225 + $0x18] sm:$0xff] %v879
        %s885 = sand.u32 %s88, 1
        %s886 = scalar_lea.sflag [#allocation7], %s885
        %s887 = sand.u32 %s88, 1
        %s888 = smul.addr %s887, 32
        %s889 = scalar_lea.vmem [#allocation6], %s888
        %s890 = sand.u32 %s114, 1
        %s891 = scalar_lea.sflag [#allocation9], %s890
        %s892 = sand.u32 %s114, 1
        %s893 = smul.addr %s892, 32
        %s894 = scalar_lea.vmem [#allocation8], %s893
        // Predicated region
        $region52: #{messaging_forward.1} parent=46 // pred_check
          %p895 = pneg %p98
        $region53: #{messaging_forward.1} parent=46 // pred_check_branch
          %897 = sbr.rel (%p895) target = $region55
        $region54: #{messaging_forward.1} parent=46 // pred_region
          %s898 = smul.u32 4, %s33
          %s900 = ssub.s32 512, 512
          %901 = vsyncadd %s886, %s900
          %s902 = smul.addr %s898, 128
          %s903 = scalar_lea.hbm %s4, %s902
          %s905 = sshll.u32 %s889, 4
          %s906 = int_to_ptr.vmem [resolvable:$true] %s905
          %908 = dma.vmem_to_hbm [thread:$0]  %s906, 512, %s903, %s886
        $region55: #{messaging_forward.1} parent=46 // pred_fallthru
          _
        // Predicated region
        $region56: #{messaging_forward.1} parent=46 // pred_check
          %p909 = pneg %p124
        $region57: #{messaging_forward.1} parent=46 // pred_check_branch
          %911 = sbr.rel (%p909) target = $region59
        $region58: #{messaging_forward.1} parent=46 // pred_region
          %s912 = smul.u32 4, %s33
          %s914 = ssub.s32 512, 512
          %915 = vsyncadd %s891, %s914
          %s916 = smul.addr %s912, 128
          %s917 = scalar_lea.hbm %s5, %s916
          %s919 = sshll.u32 %s894, 4
          %s920 = int_to_ptr.vmem [resolvable:$true] %s919
          %922 = dma.vmem_to_hbm [thread:$0]  %s920, 512, %s917, %s891
        $region59: #{messaging_forward.1} parent=46 // pred_fallthru
          _
      $region47: #{messaging_forward.1} parent=5 // pred_fallthru
        _
      %p923 = scmp.le.s32.totalorder 2, %s28
      // Predicated region
      $region60: #{messaging_forward.1} parent=5 // pred_check
        %p924 = pneg %p923
      $region61: #{messaging_forward.1} parent=5 // pred_check_branch
        %926 = sbr.rel (%p924) target = $region63
      $region62: #{messaging_forward.1} parent=5 // pred_region
        %s927 = ssub.s32 %s28, 2
        // Predicated region
        $region64: #{messaging_forward.1} parent=62 // pred_check
          %p928 = pneg %p104
        $region65: #{messaging_forward.1} parent=62 // pred_check_branch
          %930 = sbr.rel (%p928) target = $region67
        $region66: #{messaging_forward.1} parent=62 // pred_region
          %s931 = sand.u32 %s89, 1
          %s932 = scalar_lea.sflag [#allocation7], %s931
          %s933 = sand.u32 %s89, 1
          %s934 = smul.addr %s933, 32
          %s935 = scalar_lea.vmem [#allocation6], %s934
          %936 = dma.done %s932, 512
        $region67: #{messaging_forward.1} parent=62 // pred_fallthru
          _
        // Predicated region
        $region68: #{messaging_forward.1} parent=62 // pred_check
          %p937 = pneg %p130
        $region69: #{messaging_forward.1} parent=62 // pred_check_branch
          %939 = sbr.rel (%p937) target = $region71
        $region70: #{messaging_forward.1} parent=62 // pred_region
          %s940 = sand.u32 %s115, 1
          %s941 = scalar_lea.sflag [#allocation9], %s940
          %s942 = sand.u32 %s115, 1
          %s943 = smul.addr %s942, 32
          %s944 = scalar_lea.vmem [#allocation8], %s943
          %945 = dma.done %s941, 512
        $region71: #{messaging_forward.1} parent=62 // pred_fallthru
          _
      $region63: #{messaging_forward.1} parent=5 // pred_fallthru
        _
    $region6: #{messaging_forward.1} parent=1 // loop_footer
      %s32 = sadd.s32 1, %s28
    $region7: #{messaging_forward.1} parent=1 // loop_footer_branch
      %27 = sbr.rel target = $region3
    $region8: #{messaging_forward.1} parent=1 // loop_exit
      _
    %946 = vsyncpa [#allocation7], 1
    %s947 = scalar_lea.sflag [#allocation7], 1
    %948 = vsyncpa %s947, 1
    %949 = vsyncpa [#allocation9], 1
    %s950 = scalar_lea.sflag [#allocation9], 1
    %951 = vsyncpa %s950, 1

</llo_original>
